<compile_context>
chip_gen: v6e
topology: v6e:2x2x1
jax: 0.10.0
libtpu: 0.0.40
codegen_flags: <defaults>
</compile_context>

<pallas_src>
import functools

import jax
import jax.numpy as jnp
from jax.experimental import pallas as pl
from jax.experimental.pallas import tpu as pltpu

LN_EPS = 1e-5  # torch.nn.LayerNorm default


def _round_up(n, m):
    return ((n + m - 1) // m) * m


def _ln_relu(h, gamma, beta, d_true):
    """Single-pass LayerNorm over the true feature count, then ReLU.

    `h` may be zero-padded along the lane axis; gamma/beta are zero-padded so
    the padded output lanes stay exactly 0.
    """
    inv_d = jnp.float32(1.0 / d_true)
    s = jnp.sum(h, axis=-1, keepdims=True)
    s2 = jnp.sum(h * h, axis=-1, keepdims=True)
    mu = s * inv_d
    var = s2 * inv_d - mu * mu
    inv_std = jax.lax.rsqrt(var + LN_EPS)          # EUP
    out = (h - mu) * inv_std * gamma + beta
    return jnp.maximum(out, 0.0)


def _mlp_kernel(x_ref, w1_ref, b1_ref, g1_ref, be1_ref,
                w2_ref, b2_ref, g2_ref, be2_ref, o_ref,
                *, d_hid, d_out):
    # Layer 0: Linear (bf16 MXU, f32 acc) -> LayerNorm -> ReLU (dropout p=0 = id)
    h = jnp.dot(x_ref[...], w1_ref[...], preferred_element_type=jnp.float32)
    h = h + b1_ref[...]
    h = _ln_relu(h, g1_ref[...], be1_ref[...], d_hid)

    # Layer 1: Linear -> LayerNorm -> ReLU  (with_final_activation=True)
    y = jnp.dot(h.astype(jnp.bfloat16), w2_ref[...],
                preferred_element_type=jnp.float32)
    y = y + b2_ref[...]
    y = _ln_relu(y, g2_ref[...], be2_ref[...], d_out)

    o_ref[...] = y.astype(o_ref.dtype)


def _pad2(a, rows, cols):
    return jnp.pad(a, ((0, rows - a.shape[0]), (0, cols - a.shape[1])))


def mlp_forward(x, params, *, block_b=512):
    """Apply the MLP to x of shape (..., nin).  params from init_mlp_params
    (weights stored as (in, out), i.e. transpose of torch's (out, in))."""
    orig_shape = x.shape
    nin = orig_shape[-1]
    x2 = x.reshape(-1, nin)
    B = x2.shape[0]
    nhid = params["w1"].shape[1]
    nout = params["w2"].shape[1]

    # Lane-dense padded feature dims; batch tile TB = multiple of 8 sublanes.
    nin_p = _round_up(nin, 128)
    nhid_p = _round_up(nhid, 128)
    nout_p = _round_up(nout, 128)
    tb = max(8, (min(block_b, _round_up(B, 8)) // 8) * 8)
    b_p = _round_up(B, tb)
    grid = (b_p // tb,)

    # Zero-pad; matmul operands in bf16, biases / LN params stay f32.
    x_p = _pad2(x2, b_p, nin_p).astype(jnp.bfloat16)
    w1 = _pad2(params["w1"], nin_p, nhid_p).astype(jnp.bfloat16)
    w2 = _pad2(params["w2"], nhid_p, nout_p).astype(jnp.bfloat16)
    b1 = _pad2(params["b1"], 1, nhid_p)
    g1 = _pad2(params["g1"], 1, nhid_p)
    be1 = _pad2(params["be1"], 1, nhid_p)
    b2 = _pad2(params["b2"], 1, nout_p)
    g2 = _pad2(params["g2"], 1, nout_p)
    be2 = _pad2(params["be2"], 1, nout_p)

    x_spec = pl.BlockSpec((tb, nin_p), lambda i: (i, 0))
    o_spec = pl.BlockSpec((tb, nout_p), lambda i: (i, 0))

    def resident(shape):  # same block every step -> stays in VMEM, no re-DMA
        return pl.BlockSpec(shape, lambda i: (0, 0))

    out_dtype = x.dtype
    out_elt = jnp.dtype(out_dtype).itemsize

    # VMEM budget: resident bf16 weights + f32 LN params, double-buffered
    # x (bf16) / out tiles, plus intermediate headroom for h / y in f32.
    weight_bytes = (nin_p * nhid_p + nhid_p * nout_p) * 2 \
                   + (nhid_p + nout_p) * 3 * 4
    io_bytes = 2 * (tb * nin_p * 2 + tb * nout_p * out_elt)
    scratch_bytes = 4 * tb * (nhid_p + nout_p) * 4
    vmem_limit = int(min(100 * 2**20,
                         max(32 * 2**20,
                             (weight_bytes + io_bytes + scratch_bytes) * 3 // 2)))

    flops = 2 * b_p * (nin_p * nhid_p + nhid_p * nout_p)
    bytes_accessed = b_p * nin_p * 2 + b_p * nout_p * out_elt + weight_bytes

    kernel = functools.partial(_mlp_kernel, d_hid=nhid, d_out=nout)
    out_p = pl.pallas_call(
        kernel,
        out_shape=jax.ShapeDtypeStruct((b_p, nout_p), out_dtype),
        grid=grid,
        in_specs=[
            x_spec,
            resident((nin_p, nhid_p)), resident((1, nhid_p)),
            resident((1, nhid_p)), resident((1, nhid_p)),
            resident((nhid_p, nout_p)), resident((1, nout_p)),
            resident((1, nout_p)), resident((1, nout_p)),
        ],
        out_specs=o_spec,
        compiler_params=pltpu.CompilerParams(
            dimension_semantics=("parallel",),   # megacore sharding
            vmem_limit_bytes=vmem_limit),
        cost_estimate=pl.CostEstimate(
            flops=flops, transcendentals=2 * b_p, bytes_accessed=bytes_accessed),
    )(x_p, w1, b1, g1, be1, w2, b2, g2, be2)

    out = out_p[:B, :nout]
    return out.reshape(*orig_shape[:-1], nout)


def init_mlp_params(key, nin, nout):
    """Deterministic synthetic init (PyTorch-Linear-like uniform bounds)."""
    n_hid = nin
    k1, k2, k3, k4 = jax.random.split(key, 4)
    bound1 = 1.0 / jnp.sqrt(nin)
    bound2 = 1.0 / jnp.sqrt(n_hid)
    return {
        # stored as (in, out): transpose of torch's (out, in)
        "w1": jax.random.uniform(k1, (nin, n_hid), jnp.float32, -bound1, bound1),
        "b1": jax.random.uniform(k2, (1, n_hid), jnp.float32, -bound1, bound1),
        "g1": jnp.ones((1, n_hid), jnp.float32),
        "be1": jnp.zeros((1, n_hid), jnp.float32),
        "w2": jax.random.uniform(k3, (n_hid, nout), jnp.float32, -bound2, bound2),
        "b2": jax.random.uniform(k4, (1, nout), jnp.float32, -bound2, bound2),
        "g2": jnp.ones((1, nout), jnp.float32),
        "be2": jnp.zeros((1, nout), jnp.float32),
    }


def mlp_reference(x, p):
    """Pure-JAX reference mirroring the kernel math (bf16 matmul, f32 acc)."""
    nhid = p["w1"].shape[1]
    nout = p["w2"].shape[1]
    h = jnp.dot(x.astype(jnp.bfloat16), p["w1"].astype(jnp.bfloat16),
                preferred_element_type=jnp.float32) + p["b1"]
    h = _ln_relu(h, p["g1"], p["be1"], nhid)
    y = jnp.dot(h.astype(jnp.bfloat16), p["w2"].astype(jnp.bfloat16),
                preferred_element_type=jnp.float32) + p["b2"]
    y = _ln_relu(y, p["g2"], p["be2"], nout)
    return y.astype(x.dtype)


if __name__ == "__main__":
    # Small demo shapes: n_hid = nin (as in the PyTorch module); odd sizes to
    # exercise lane/batch padding; block_b small so the grid has >1 step.
    nin, nout, batch = 48, 48, 80
    key = jax.random.PRNGKey(0)
    kx, kp = jax.random.split(key)
    x = jax.random.normal(kx, (batch, nin), jnp.float32)
    params = init_mlp_params(kp, nin, nout)

    out = mlp_forward(x, params, block_b=32)
    out = jax.block_until_ready(out)

    ref = mlp_reference(x, params)
    assert out.shape == (batch, nout)
    max_err = float(jnp.max(jnp.abs(out - ref)))
    assert max_err < 2e-3, f"mismatch vs reference: max abs err {max_err}"
    print("KERNEL_OK")
</pallas_src>

<mosaic_0001>
module attributes {stable_mosaic.version = 11 : i64} {
  func.func @_mlp_kernel(%arg0: i32, %arg1: memref<32x128xbf16, #tpu.memory_space<vmem>>, %arg2: memref<128x128xbf16, #tpu.memory_space<vmem>>, %arg3: memref<1x128xf32, #tpu.memory_space<vmem>>, %arg4: memref<1x128xf32, #tpu.memory_space<vmem>>, %arg5: memref<1x128xf32, #tpu.memory_space<vmem>>, %arg6: memref<128x128xbf16, #tpu.memory_space<vmem>>, %arg7: memref<1x128xf32, #tpu.memory_space<vmem>>, %arg8: memref<1x128xf32, #tpu.memory_space<vmem>>, %arg9: memref<1x128xf32, #tpu.memory_space<vmem>>, %arg10: memref<32x128xf32, #tpu.memory_space<vmem>>) attributes {dimension_semantics = [#tpu.dimension_semantics<parallel>], iteration_bounds = array<i64: 3>, scalar_prefetch = 0 : i64, scratch_operands = 0 : i64, tpu.core_type = #tpu.core_type<tc>, window_params = [{transform_indices = @transform_0, window_bounds = array<i64: 32, 128>}, {pipeline_mode = #tpu.pipeline_mode<synchronous>, transform_indices = @transform_1, window_bounds = array<i64: 128, 128>}, {pipeline_mode = #tpu.pipeline_mode<synchronous>, transform_indices = @transform_2, window_bounds = array<i64: 1, 128>}, {pipeline_mode = #tpu.pipeline_mode<synchronous>, transform_indices = @transform_3, window_bounds = array<i64: 1, 128>}, {pipeline_mode = #tpu.pipeline_mode<synchronous>, transform_indices = @transform_4, window_bounds = array<i64: 1, 128>}, {pipeline_mode = #tpu.pipeline_mode<synchronous>, transform_indices = @transform_5, window_bounds = array<i64: 128, 128>}, {pipeline_mode = #tpu.pipeline_mode<synchronous>, transform_indices = @transform_6, window_bounds = array<i64: 1, 128>}, {pipeline_mode = #tpu.pipeline_mode<synchronous>, transform_indices = @transform_7, window_bounds = array<i64: 1, 128>}, {pipeline_mode = #tpu.pipeline_mode<synchronous>, transform_indices = @transform_8, window_bounds = array<i64: 1, 128>}, {transform_indices = @transform_9, window_bounds = array<i64: 32, 128>}]} {
    %c0 = arith.constant 0 : index
    %c0_0 = arith.constant 0 : index
    %0 = vector.load %arg1[%c0, %c0_0] : memref<32x128xbf16, #tpu.memory_space<vmem>>, vector<32x128xbf16>
    %c0_1 = arith.constant 0 : index
    %c0_2 = arith.constant 0 : index
    %1 = vector.load %arg2[%c0_1, %c0_2] : memref<128x128xbf16, #tpu.memory_space<vmem>>, vector<128x128xbf16>
    %cst = arith.constant dense<0.000000e+00> : vector<32x128xf32>
    %2 = tpu.matmul %0, %1, %cst {dimension_numbers = #tpu.dot_dimension_numbers<[1], [0], [0], [1], [0, 0, 1, 1], [], []>} : vector<32x128xbf16>, vector<128x128xbf16>, vector<32x128xf32> -> vector<32x128xf32>
    %c0_3 = arith.constant 0 : index
    %c0_4 = arith.constant 0 : index
    %3 = vector.load %arg3[%c0_3, %c0_4] : memref<1x128xf32, #tpu.memory_space<vmem>>, vector<1x128xf32>
    %4 = vector.broadcast %3 : vector<1x128xf32> to vector<32x128xf32>
    %5 = arith.addf %2, %4 : vector<32x128xf32>
    %c0_5 = arith.constant 0 : index
    %c0_6 = arith.constant 0 : index
    %6 = vector.load %arg4[%c0_5, %c0_6] : memref<1x128xf32, #tpu.memory_space<vmem>>, vector<1x128xf32>
    %c0_7 = arith.constant 0 : index
    %c0_8 = arith.constant 0 : index
    %7 = vector.load %arg5[%c0_7, %c0_8] : memref<1x128xf32, #tpu.memory_space<vmem>>, vector<1x128xf32>
    %cst_9 = arith.constant dense<0.000000e+00> : vector<32xf32>
    %8 = vector.multi_reduction <add>, %5, %cst_9 [1] : vector<32x128xf32> to vector<32xf32>
    %9 = vector.shape_cast %8 : vector<32xf32> to vector<32x1xf32>
    %10 = arith.mulf %5, %5 : vector<32x128xf32>
    %cst_10 = arith.constant dense<0.000000e+00> : vector<32xf32>
    %11 = vector.multi_reduction <add>, %10, %cst_10 [1] : vector<32x128xf32> to vector<32xf32>
    %12 = vector.shape_cast %11 : vector<32xf32> to vector<32x1xf32>
    %cst_11 = arith.constant 0.020833334 : f32
    %13 = vector.broadcast %cst_11 : f32 to vector<32x1xf32>
    %14 = arith.mulf %9, %13 : vector<32x1xf32>
    %cst_12 = arith.constant 0.020833334 : f32
    %15 = vector.broadcast %cst_12 : f32 to vector<32x1xf32>
    %16 = arith.mulf %12, %15 : vector<32x1xf32>
    %17 = arith.mulf %14, %14 : vector<32x1xf32>
    %18 = arith.subf %16, %17 : vector<32x1xf32>
    %cst_13 = arith.constant 9.99999974E-6 : f32
    %19 = vector.broadcast %cst_13 : f32 to vector<32x1xf32>
    %20 = arith.addf %18, %19 : vector<32x1xf32>
    %21 = math.rsqrt %20 : vector<32x1xf32>
    %22 = vector.broadcast %14 : vector<32x1xf32> to vector<32x128xf32>
    %23 = arith.subf %5, %22 : vector<32x128xf32>
    %24 = vector.broadcast %21 : vector<32x1xf32> to vector<32x128xf32>
    %25 = arith.mulf %23, %24 : vector<32x128xf32>
    %26 = vector.broadcast %6 : vector<1x128xf32> to vector<32x128xf32>
    %27 = arith.mulf %25, %26 : vector<32x128xf32>
    %28 = vector.broadcast %7 : vector<1x128xf32> to vector<32x128xf32>
    %29 = arith.addf %27, %28 : vector<32x128xf32>
    %cst_14 = arith.constant 0.000000e+00 : f32
    %30 = vector.broadcast %cst_14 : f32 to vector<32x128xf32>
    %31 = arith.maximumf %29, %30 : vector<32x128xf32>
    %32 = arith.truncf %31 : vector<32x128xf32> to vector<32x128xbf16>
    %c0_15 = arith.constant 0 : index
    %c0_16 = arith.constant 0 : index
    %33 = vector.load %arg6[%c0_15, %c0_16] : memref<128x128xbf16, #tpu.memory_space<vmem>>, vector<128x128xbf16>
    %cst_17 = arith.constant dense<0.000000e+00> : vector<32x128xf32>
    %34 = tpu.matmul %32, %33, %cst_17 {dimension_numbers = #tpu.dot_dimension_numbers<[1], [0], [0], [1], [0, 0, 1, 1], [], []>} : vector<32x128xbf16>, vector<128x128xbf16>, vector<32x128xf32> -> vector<32x128xf32>
    %c0_18 = arith.constant 0 : index
    %c0_19 = arith.constant 0 : index
    %35 = vector.load %arg7[%c0_18, %c0_19] : memref<1x128xf32, #tpu.memory_space<vmem>>, vector<1x128xf32>
    %36 = vector.broadcast %35 : vector<1x128xf32> to vector<32x128xf32>
    %37 = arith.addf %34, %36 : vector<32x128xf32>
    %c0_20 = arith.constant 0 : index
    %c0_21 = arith.constant 0 : index
    %38 = vector.load %arg8[%c0_20, %c0_21] : memref<1x128xf32, #tpu.memory_space<vmem>>, vector<1x128xf32>
    %c0_22 = arith.constant 0 : index
    %c0_23 = arith.constant 0 : index
    %39 = vector.load %arg9[%c0_22, %c0_23] : memref<1x128xf32, #tpu.memory_space<vmem>>, vector<1x128xf32>
    %cst_24 = arith.constant dense<0.000000e+00> : vector<32xf32>
    %40 = vector.multi_reduction <add>, %37, %cst_24 [1] : vector<32x128xf32> to vector<32xf32>
    %41 = vector.shape_cast %40 : vector<32xf32> to vector<32x1xf32>
    %42 = arith.mulf %37, %37 : vector<32x128xf32>
    %cst_25 = arith.constant dense<0.000000e+00> : vector<32xf32>
    %43 = vector.multi_reduction <add>, %42, %cst_25 [1] : vector<32x128xf32> to vector<32xf32>
    %44 = vector.shape_cast %43 : vector<32xf32> to vector<32x1xf32>
    %cst_26 = arith.constant 0.020833334 : f32
    %45 = vector.broadcast %cst_26 : f32 to vector<32x1xf32>
    %46 = arith.mulf %41, %45 : vector<32x1xf32>
    %cst_27 = arith.constant 0.020833334 : f32
    %47 = vector.broadcast %cst_27 : f32 to vector<32x1xf32>
    %48 = arith.mulf %44, %47 : vector<32x1xf32>
    %49 = arith.mulf %46, %46 : vector<32x1xf32>
    %50 = arith.subf %48, %49 : vector<32x1xf32>
    %cst_28 = arith.constant 9.99999974E-6 : f32
    %51 = vector.broadcast %cst_28 : f32 to vector<32x1xf32>
    %52 = arith.addf %50, %51 : vector<32x1xf32>
    %53 = math.rsqrt %52 : vector<32x1xf32>
    %54 = vector.broadcast %46 : vector<32x1xf32> to vector<32x128xf32>
    %55 = arith.subf %37, %54 : vector<32x128xf32>
    %56 = vector.broadcast %53 : vector<32x1xf32> to vector<32x128xf32>
    %57 = arith.mulf %55, %56 : vector<32x128xf32>
    %58 = vector.broadcast %38 : vector<1x128xf32> to vector<32x128xf32>
    %59 = arith.mulf %57, %58 : vector<32x128xf32>
    %60 = vector.broadcast %39 : vector<1x128xf32> to vector<32x128xf32>
    %61 = arith.addf %59, %60 : vector<32x128xf32>
    %cst_29 = arith.constant 0.000000e+00 : f32
    %62 = vector.broadcast %cst_29 : f32 to vector<32x128xf32>
    %63 = arith.maximumf %61, %62 : vector<32x128xf32>
    %c0_30 = arith.constant 0 : index
    %c0_31 = arith.constant 0 : index
    %64 = vector.load %arg10[%c0_30, %c0_31] : memref<32x128xf32, #tpu.memory_space<vmem>>, vector<32x128xf32>
    tpu.vector_store %arg10[%c0_30, %c0_31], %63 {strides = array<i32>} : memref<32x128xf32, #tpu.memory_space<vmem>>, vector<32x128xf32>,
    return
  }
  func.func @transform_0(%arg0: i32) -> (i32, i32) {
    %c0_i32 = arith.constant 0 : i32
    %c0_i32_0 = arith.constant 0 : i32
    return %arg0, %c0_i32 : i32, i32
  }
  func.func @transform_1(%arg0: i32) -> (i32, i32) {
    %c0_i32 = arith.constant 0 : i32
    %c0_i32_0 = arith.constant 0 : i32
    %c0_i32_1 = arith.constant 0 : i32
    return %c0_i32, %c0_i32_0 : i32, i32
  }
  func.func @transform_2(%arg0: i32) -> (i32, i32) {
    %c0_i32 = arith.constant 0 : i32
    %c0_i32_0 = arith.constant 0 : i32
    %c0_i32_1 = arith.constant 0 : i32
    return %c0_i32, %c0_i32_0 : i32, i32
  }
  func.func @transform_3(%arg0: i32) -> (i32, i32) {
    %c0_i32 = arith.constant 0 : i32
    %c0_i32_0 = arith.constant 0 : i32
    %c0_i32_1 = arith.constant 0 : i32
    return %c0_i32, %c0_i32_0 : i32, i32
  }
  func.func @transform_4(%arg0: i32) -> (i32, i32) {
    %c0_i32 = arith.constant 0 : i32
    %c0_i32_0 = arith.constant 0 : i32
    %c0_i32_1 = arith.constant 0 : i32
    return %c0_i32, %c0_i32_0 : i32, i32
  }
  func.func @transform_5(%arg0: i32) -> (i32, i32) {
    %c0_i32 = arith.constant 0 : i32
    %c0_i32_0 = arith.constant 0 : i32
    %c0_i32_1 = arith.constant 0 : i32
    return %c0_i32, %c0_i32_0 : i32, i32
  }
  func.func @transform_6(%arg0: i32) -> (i32, i32) {
    %c0_i32 = arith.constant 0 : i32
    %c0_i32_0 = arith.constant 0 : i32
    %c0_i32_1 = arith.constant 0 : i32
    return %c0_i32, %c0_i32_0 : i32, i32
  }
  func.func @transform_7(%arg0: i32) -> (i32, i32) {
    %c0_i32 = arith.constant 0 : i32
    %c0_i32_0 = arith.constant 0 : i32
    %c0_i32_1 = arith.constant 0 : i32
    return %c0_i32, %c0_i32_0 : i32, i32
  }
  func.func @transform_8(%arg0: i32) -> (i32, i32) {
    %c0_i32 = arith.constant 0 : i32
    %c0_i32_0 = arith.constant 0 : i32
    %c0_i32_1 = arith.constant 0 : i32
    return %c0_i32, %c0_i32_0 : i32, i32
  }
  func.func @transform_9(%arg0: i32) -> (i32, i32) {
    %c0_i32 = arith.constant 0 : i32
    %c0_i32_0 = arith.constant 0 : i32
    return %arg0, %c0_i32 : i32, i32
  }
}

</mosaic_0001>

<llo_original>
// kernel: tpu_custom_call.1
$region0: #{tpu_custom_call.1}
  #allocation0 [shape = 'u32[]', space=smem, size = 0x4, offset = 0x4, fixed_abs, tag = 'smem constant byte address 0x4 - core index']
  #allocation1 [shape = 'u32[144,128]{1,0:T(1,128)}', space=vmem, size = 0x12000, scoped, tag = 'internal scratch']
  %s0 = inlined_call_operand.hbm [shape: bf16[96,128], index: 0, kind: input, shape index: {}]
  %s1 = inlined_call_operand.hbm [shape: bf16[128,128], index: 1, kind: input, shape index: {}]
  %s2 = inlined_call_operand.vmem [shape: f32[1,128], index: 2, kind: input, shape index: {}]
  %s3 = inlined_call_operand.vmem [shape: f32[1,128], index: 3, kind: input, shape index: {}]
  %s4 = inlined_call_operand.vmem [shape: f32[1,128], index: 4, kind: input, shape index: {}]
  %s5 = inlined_call_operand.hbm [shape: bf16[128,128], index: 5, kind: input, shape index: {}]
  %s6 = inlined_call_operand.vmem [shape: f32[1,128], index: 6, kind: input, shape index: {}]
  %s7 = inlined_call_operand.vmem [shape: f32[1,128], index: 7, kind: input, shape index: {}]
  %s8 = inlined_call_operand.vmem [shape: f32[1,128], index: 8, kind: input, shape index: {}]
  %s9 = inlined_call_operand.hbm [shape: f32[96,128], index: 9, kind: output, shape index: {}]
  %s10 = sld [smem:[#allocation0]]
  $region81: #{tpu_custom_call.1} parent=0
    _
  %s12 = ssub.s32 1, %s10
  %s13 = scalar_select 0, %s12, %s10
  $region1: #{tpu_custom_call.1} parent=0
    #allocation2 [shape = 'u8[16384]{0}', space=vmem, size = 0x4000, scoped, tag = 'input window, operand 0']
    #allocation3 [shape = 's32[2]{0}', space=sflag, size = 0x8, scoped, tag = 'scoped memory for tpu_custom_call.1']
    #allocation4 [shape = 's32[2]{0}', space=sflag, size = 0x8, scoped, tag = 'scoped memory for tpu_custom_call.1']
    #allocation5 [shape = 'u8[32768]{0}', space=vmem, size = 0x8000, scoped, tag = 'input window, operand 1, single buffered']
    #allocation6 [shape = 's32[1]{0}', space=sflag, size = 0x4, scoped, tag = 'scoped memory for tpu_custom_call.1']
    #allocation7 [shape = 'u8[32768]{0}', space=vmem, size = 0x8000, scoped, tag = 'input window, operand 5, single buffered']
    #allocation8 [shape = 'u8[32768]{0}', space=vmem, size = 0x8000, scoped, tag = 'output window, operand 0']
    %14 = vsyncpa [#allocation3], 0
    %s15 = scalar_lea.sflag [#allocation3], 1
    %16 = vsyncpa %s15, 0
    %17 = vsyncpa [#allocation6], 0
    %18 = vsyncpa [#allocation4], 0
    %s19 = scalar_lea.sflag [#allocation4], 1
    %20 = vsyncpa %s19, 0
    loop: start=0, step=1, limit=5
    $region2: #{tpu_custom_call.1} parent=1 // loop_pre_header
      _
    $region3: #{tpu_custom_call.1} parent=1 // loop_header
      %s22 = sphi 0, %s26
      %p23 = scmp.ge.s32.totalorder %s22, 5
      %s32 = sphi 0, %s34
      %s35 = sphi 0, %s32
      %s36 = sphi 0, %s35
      %s52 = sphi 0, %s36
      %s56 = sphi 0, %s56
      %s58 = sphi 0, %s56
      %s59 = sphi 0, %s58
      %s73 = sphi 0, %s59
      %s77 = sphi 0, %s77
      %s79 = sphi 0, %s77
      %s80 = sphi 0, %s79
      %s94 = sphi 0, %s80
      %s98 = sphi 0, %s98
      %s100 = sphi 0, %s98
      %s101 = sphi 0, %s100
      %s115 = sphi 0, %s101
      %s119 = sphi 0, %s119
      %s121 = sphi 0, %s119
      %s122 = sphi 0, %s121
      %s136 = sphi 0, %s122
      %s140 = sphi 0, %s140
      %s142 = sphi 0, %s140
      %s143 = sphi 0, %s142
      %s157 = sphi 0, %s143
      %s161 = sphi 0, %s161
      %s163 = sphi 0, %s161
      %s164 = sphi 0, %s163
      %s178 = sphi 0, %s164
      %s182 = sphi 0, %s182
      %s184 = sphi 0, %s182
      %s185 = sphi 0, %s184
      %s199 = sphi 0, %s185
      %s203 = sphi 0, %s203
      %s205 = sphi 0, %s203
      %s206 = sphi 0, %s205
      %s220 = sphi 0, %s206
      %s226 = sphi 0, %s228
      %s229 = sphi 0, %s226
      %s230 = sphi 0, %s229
      %s246 = sphi 0, %s230
    $region4: #{tpu_custom_call.1} parent=1 // loop_header_branch
      %25 = sbr.rel (%p23) target = $region8
    $region5: #{tpu_custom_call.1} parent=1 // loop_body
      %s27 = ssub.s32 %s22, 1
      %s28 = ssub.s32 %s22, 2
      %s29 = sadd.s32 %s22, 1
      %s30 = ssub.s32 %s22, %s29
      %p31 = scmp.eq.s32.totalorder %s30, 0
      %s33 = sadd.s32 %s32, 1
      %s34 = scalar_select %p31, %s32, %s33
      %p37 = pneg %p31
      %p38 = scmp.eq.s32.totalorder %s22, 2
      %p39 = por %p37, %p38
      %p40 = scmp.ne.s32.totalorder %s32, %s35
      %p41 = scmp.eq.s32.totalorder %s22, 0
      %p42 = por %p40, %p41
      %p43 = scmp.ne.s32.totalorder %s32, %s35
      %p44 = scmp.eq.s32.totalorder %s27, 2
      %p45 = por %p43, %p44
      %p46 = scmp.ne.s32.totalorder %s35, %s36
      %p47 = scmp.eq.s32.totalorder %s27, 0
      %p48 = por %p46, %p47
      %p49 = scmp.ne.s32.totalorder %s35, %s36
      %p50 = scmp.eq.s32.totalorder %s28, 2
      %p51 = por %p49, %p50
      %p53 = scmp.ne.s32.totalorder %s36, %s52
      %p54 = scmp.eq.s32.totalorder %s28, 0
      %p55 = por %p53, %p54
      %s57 = sadd.s32 %s56, 1
      %p60 = scmp.eq.s32.totalorder %s22, 2
      %p61 = scmp.ne.s32.totalorder %s56, %s58
      %p62 = scmp.eq.s32.totalorder %s22, 0
      %p63 = por %p61, %p62
      %p64 = scmp.ne.s32.totalorder %s56, %s58
      %p65 = scmp.eq.s32.totalorder %s27, 2
      %p66 = por %p64, %p65
      %p67 = scmp.ne.s32.totalorder %s58, %s59
      %p68 = scmp.eq.s32.totalorder %s27, 0
      %p69 = por %p67, %p68
      %p70 = scmp.ne.s32.totalorder %s58, %s59
      %p71 = scmp.eq.s32.totalorder %s28, 2
      %p72 = por %p70, %p71
      %p74 = scmp.ne.s32.totalorder %s59, %s73
      %p75 = scmp.eq.s32.totalorder %s28, 0
      %p76 = por %p74, %p75
      %s78 = sadd.s32 %s77, 1
      %p81 = scmp.eq.s32.totalorder %s22, 2
      %p82 = scmp.ne.s32.totalorder %s77, %s79
      %p83 = scmp.eq.s32.totalorder %s22, 0
      %p84 = por %p82, %p83
      %p85 = scmp.ne.s32.totalorder %s77, %s79
      %p86 = scmp.eq.s32.totalorder %s27, 2
      %p87 = por %p85, %p86
      %p88 = scmp.ne.s32.totalorder %s79, %s80
      %p89 = scmp.eq.s32.totalorder %s27, 0
      %p90 = por %p88, %p89
      %p91 = scmp.ne.s32.totalorder %s79, %s80
      %p92 = scmp.eq.s32.totalorder %s28, 2
      %p93 = por %p91, %p92
      %p95 = scmp.ne.s32.totalorder %s80, %s94
      %p96 = scmp.eq.s32.totalorder %s28, 0
      %p97 = por %p95, %p96
      %s99 = sadd.s32 %s98, 1
      %p102 = scmp.eq.s32.totalorder %s22, 2
      %p103 = scmp.ne.s32.totalorder %s98, %s100
      %p104 = scmp.eq.s32.totalorder %s22, 0
      %p105 = por %p103, %p104
      %p106 = scmp.ne.s32.totalorder %s98, %s100
      %p107 = scmp.eq.s32.totalorder %s27, 2
      %p108 = por %p106, %p107
      %p109 = scmp.ne.s32.totalorder %s100, %s101
      %p110 = scmp.eq.s32.totalorder %s27, 0
      %p111 = por %p109, %p110
      %p112 = scmp.ne.s32.totalorder %s100, %s101
      %p113 = scmp.eq.s32.totalorder %s28, 2
      %p114 = por %p112, %p113
      %p116 = scmp.ne.s32.totalorder %s101, %s115
      %p117 = scmp.eq.s32.totalorder %s28, 0
      %p118 = por %p116, %p117
      %s120 = sadd.s32 %s119, 1
      %p123 = scmp.eq.s32.totalorder %s22, 2
      %p124 = scmp.ne.s32.totalorder %s119, %s121
      %p125 = scmp.eq.s32.totalorder %s22, 0
      %p126 = por %p124, %p125
      %p127 = scmp.ne.s32.totalorder %s119, %s121
      %p128 = scmp.eq.s32.totalorder %s27, 2
      %p129 = por %p127, %p128
      %p130 = scmp.ne.s32.totalorder %s121, %s122
      %p131 = scmp.eq.s32.totalorder %s27, 0
      %p132 = por %p130, %p131
      %p133 = scmp.ne.s32.totalorder %s121, %s122
      %p134 = scmp.eq.s32.totalorder %s28, 2
      %p135 = por %p133, %p134
      %p137 = scmp.ne.s32.totalorder %s122, %s136
      %p138 = scmp.eq.s32.totalorder %s28, 0
      %p139 = por %p137, %p138
      %s141 = sadd.s32 %s140, 1
      %p144 = scmp.eq.s32.totalorder %s22, 2
      %p145 = scmp.ne.s32.totalorder %s140, %s142
      %p146 = scmp.eq.s32.totalorder %s22, 0
      %p147 = por %p145, %p146
      %p148 = scmp.ne.s32.totalorder %s140, %s142
      %p149 = scmp.eq.s32.totalorder %s27, 2
      %p150 = por %p148, %p149
      %p151 = scmp.ne.s32.totalorder %s142, %s143
      %p152 = scmp.eq.s32.totalorder %s27, 0
      %p153 = por %p151, %p152
      %p154 = scmp.ne.s32.totalorder %s142, %s143
      %p155 = scmp.eq.s32.totalorder %s28, 2
      %p156 = por %p154, %p155
      %p158 = scmp.ne.s32.totalorder %s143, %s157
      %p159 = scmp.eq.s32.totalorder %s28, 0
      %p160 = por %p158, %p159
      %s162 = sadd.s32 %s161, 1
      %p165 = scmp.eq.s32.totalorder %s22, 2
      %p166 = scmp.ne.s32.totalorder %s161, %s163
      %p167 = scmp.eq.s32.totalorder %s22, 0
      %p168 = por %p166, %p167
      %p169 = scmp.ne.s32.totalorder %s161, %s163
      %p170 = scmp.eq.s32.totalorder %s27, 2
      %p171 = por %p169, %p170
      %p172 = scmp.ne.s32.totalorder %s163, %s164
      %p173 = scmp.eq.s32.totalorder %s27, 0
      %p174 = por %p172, %p173
      %p175 = scmp.ne.s32.totalorder %s163, %s164
      %p176 = scmp.eq.s32.totalorder %s28, 2
      %p177 = por %p175, %p176
      %p179 = scmp.ne.s32.totalorder %s164, %s178
      %p180 = scmp.eq.s32.totalorder %s28, 0
      %p181 = por %p179, %p180
      %s183 = sadd.s32 %s182, 1
      %p186 = scmp.eq.s32.totalorder %s22, 2
      %p187 = scmp.ne.s32.totalorder %s182, %s184
      %p188 = scmp.eq.s32.totalorder %s22, 0
      %p189 = por %p187, %p188
      %p190 = scmp.ne.s32.totalorder %s182, %s184
      %p191 = scmp.eq.s32.totalorder %s27, 2
      %p192 = por %p190, %p191
      %p193 = scmp.ne.s32.totalorder %s184, %s185
      %p194 = scmp.eq.s32.totalorder %s27, 0
      %p195 = por %p193, %p194
      %p196 = scmp.ne.s32.totalorder %s184, %s185
      %p197 = scmp.eq.s32.totalorder %s28, 2
      %p198 = por %p196, %p197
      %p200 = scmp.ne.s32.totalorder %s185, %s199
      %p201 = scmp.eq.s32.totalorder %s28, 0
      %p202 = por %p200, %p201
      %s204 = sadd.s32 %s203, 1
      %p207 = scmp.eq.s32.totalorder %s22, 2
      %p208 = scmp.ne.s32.totalorder %s203, %s205
      %p209 = scmp.eq.s32.totalorder %s22, 0
      %p210 = por %p208, %p209
      %p211 = scmp.ne.s32.totalorder %s203, %s205
      %p212 = scmp.eq.s32.totalorder %s27, 2
      %p213 = por %p211, %p212
      %p214 = scmp.ne.s32.totalorder %s205, %s206
      %p215 = scmp.eq.s32.totalorder %s27, 0
      %p216 = por %p214, %p215
      %p217 = scmp.ne.s32.totalorder %s205, %s206
      %p218 = scmp.eq.s32.totalorder %s28, 2
      %p219 = por %p217, %p218
      %p221 = scmp.ne.s32.totalorder %s206, %s220
      %p222 = scmp.eq.s32.totalorder %s28, 0
      %p223 = por %p221, %p222
      %s224 = ssub.s32 %s22, %s29
      %p225 = scmp.eq.s32.totalorder %s224, 0
      %s227 = sadd.s32 %s226, 1
      %s228 = scalar_select %p225, %s226, %s227
      %p231 = pneg %p225
      %p232 = scmp.eq.s32.totalorder %s22, 2
      %p233 = por %p231, %p232
      %p234 = scmp.ne.s32.totalorder %s226, %s229
      %p235 = scmp.eq.s32.totalorder %s22, 0
      %p236 = por %p234, %p235
      %p237 = scmp.ne.s32.totalorder %s226, %s229
      %p238 = scmp.eq.s32.totalorder %s27, 2
      %p239 = por %p237, %p238
      %p240 = scmp.ne.s32.totalorder %s229, %s230
      %p241 = scmp.eq.s32.totalorder %s27, 0
      %p242 = por %p240, %p241
      %p243 = scmp.ne.s32.totalorder %s229, %s230
      %p244 = scmp.eq.s32.totalorder %s28, 2
      %p245 = por %p243, %p244
      %p247 = scmp.ne.s32.totalorder %s230, %s246
      %p248 = scmp.eq.s32.totalorder %s28, 0
      %p249 = por %p247, %p248
      %p250 = scmp.le.s32.totalorder 1, %s22
      %p251 = scmp.lt.s32.totalorder %s22, 4
      %p252 = pnand %p250, %p251
      %p253 = pneg %p252
      // Predicated region
      $region9: #{tpu_custom_call.1} parent=5 // pred_check
        _
      $region10: #{tpu_custom_call.1} parent=5 // pred_check_branch
        %255 = sbr.rel (%p252) target = $region12
      $region11: #{tpu_custom_call.1} parent=5 // pred_region
        %s256 = ssub.s32 %s22, 1
        // Predicated region
        $region13: #{tpu_custom_call.1} parent=11 // pred_check
          %p257 = pneg %p69
        $region14: #{tpu_custom_call.1} parent=11 // pred_check_branch
          %259 = sbr.rel (%p257) target = $region16
        $region15: #{tpu_custom_call.1} parent=11 // pred_region
          %s261 = ssub.s32 1024, 1024
          %262 = vsyncadd [#allocation6], %s261
          %s263 = sshll.u32 [#allocation5], 4
          %s264 = int_to_ptr.vmem [resolvable:$true] %s263
          %269 = dma.hbm_to_vmem [thread:$0]  %s1, 1024, %s264, [#allocation6], 64, 64, 4
        $region16: #{tpu_custom_call.1} parent=11 // pred_fallthru
          _
        // Predicated region
        $region17: #{tpu_custom_call.1} parent=11 // pred_check
          %p270 = pneg %p90
        $region18: #{tpu_custom_call.1} parent=11 // pred_check_branch
          %272 = sbr.rel (%p270) target = $region20
        $region19: #{tpu_custom_call.1} parent=11 // pred_region
          _
        $region20: #{tpu_custom_call.1} parent=11 // pred_fallthru
          _
        // Predicated region
        $region21: #{tpu_custom_call.1} parent=11 // pred_check
          %p273 = pneg %p111
        $region22: #{tpu_custom_call.1} parent=11 // pred_check_branch
          %275 = sbr.rel (%p273) target = $region24
        $region23: #{tpu_custom_call.1} parent=11 // pred_region
          _
        $region24: #{tpu_custom_call.1} parent=11 // pred_fallthru
          _
        // Predicated region
        $region25: #{tpu_custom_call.1} parent=11 // pred_check
          %p276 = pneg %p132
        $region26: #{tpu_custom_call.1} parent=11 // pred_check_branch
          %278 = sbr.rel (%p276) target = $region28
        $region27: #{tpu_custom_call.1} parent=11 // pred_region
          _
        $region28: #{tpu_custom_call.1} parent=11 // pred_fallthru
          _
        // Predicated region
        $region29: #{tpu_custom_call.1} parent=11 // pred_check
          %p279 = pneg %p153
        $region30: #{tpu_custom_call.1} parent=11 // pred_check_branch
          %281 = sbr.rel (%p279) target = $region32
        $region31: #{tpu_custom_call.1} parent=11 // pred_region
          %s283 = ssub.s32 1024, 1024
          %284 = vsyncadd [#allocation6], %s283
          %s285 = sshll.u32 [#allocation7], 4
          %s286 = int_to_ptr.vmem [resolvable:$true] %s285
          %291 = dma.hbm_to_vmem [thread:$0]  %s5, 1024, %s286, [#allocation6], 64, 64, 4
        $region32: #{tpu_custom_call.1} parent=11 // pred_fallthru
          _
        // Predicated region
        $region33: #{tpu_custom_call.1} parent=11 // pred_check
          %p292 = pneg %p174
        $region34: #{tpu_custom_call.1} parent=11 // pred_check_branch
          %294 = sbr.rel (%p292) target = $region36
        $region35: #{tpu_custom_call.1} parent=11 // pred_region
          _
        $region36: #{tpu_custom_call.1} parent=11 // pred_fallthru
          _
        // Predicated region
        $region37: #{tpu_custom_call.1} parent=11 // pred_check
          %p295 = pneg %p195
        $region38: #{tpu_custom_call.1} parent=11 // pred_check_branch
          %297 = sbr.rel (%p295) target = $region40
        $region39: #{tpu_custom_call.1} parent=11 // pred_region
          _
        $region40: #{tpu_custom_call.1} parent=11 // pred_fallthru
          _
        // Predicated region
        $region41: #{tpu_custom_call.1} parent=11 // pred_check
          %p298 = pneg %p216
        $region42: #{tpu_custom_call.1} parent=11 // pred_check_branch
          %300 = sbr.rel (%p298) target = $region44
        $region43: #{tpu_custom_call.1} parent=11 // pred_region
          _
        $region44: #{tpu_custom_call.1} parent=11 // pred_fallthru
          _
      $region12: #{tpu_custom_call.1} parent=5 // pred_fallthru
        _
      %p301 = scmp.lt.s32.totalorder %s22, 3
      // Predicated region
      $region45: #{tpu_custom_call.1} parent=5 // pred_check
        %p302 = pneg %p301
      $region46: #{tpu_custom_call.1} parent=5 // pred_check_branch
        %304 = sbr.rel (%p302) target = $region48
      $region47: #{tpu_custom_call.1} parent=5 // pred_region
        // Predicated region
        $region49: #{tpu_custom_call.1} parent=47 // pred_check
          %p305 = pneg %p42
        $region50: #{tpu_custom_call.1} parent=47 // pred_check_branch
          %307 = sbr.rel (%p305) target = $region52
        $region51: #{tpu_custom_call.1} parent=47 // pred_region
          %s308 = sand.u32 %s32, 1
          %s309 = scalar_lea.sflag [#allocation3], %s308
          %s310 = sand.u32 %s32, 1
          %s311 = smul.addr %s310, 16
          %s312 = scalar_lea.vmem [#allocation2], %s311
          %s313 = smul.u32 4, %s22
          %s315 = ssub.s32 256, 256
          %316 = vsyncadd %s309, %s315
          %s317 = smul.addr %s313, 64
          %s318 = scalar_lea.hbm %s0, %s317
          %s319 = sshll.u32 %s312, 4
          %s320 = int_to_ptr.vmem [resolvable:$true] %s319
          %325 = dma.hbm_to_vmem [thread:$0]  %s318, 256, %s320, %s309, 64, 64, 4
        $region52: #{tpu_custom_call.1} parent=47 // pred_fallthru
          _
      $region48: #{tpu_custom_call.1} parent=5 // pred_fallthru
        _
      %p326 = scmp.le.s32.totalorder 1, %s22
      %p327 = scmp.lt.s32.totalorder %s22, 4
      %p328 = pnand %p326, %p327
      %p329 = pneg %p328
      // Predicated region
      $region53: #{tpu_custom_call.1} parent=5 // pred_check
        _
      $region54: #{tpu_custom_call.1} parent=5 // pred_check_branch
        %331 = sbr.rel (%p328) target = $region56
      $region55: #{tpu_custom_call.1} parent=5 // pred_region
        %s332 = ssub.s32 %s22, 1
        %s333 = sand.u32 %s35, 1
        %s334 = scalar_lea.sflag [#allocation3], %s333
        %s335 = sand.u32 %s35, 1
        %s336 = smul.addr %s335, 16
        %s337 = scalar_lea.vmem [#allocation2], %s336
        // Predicated region
        $region57: #{tpu_custom_call.1} parent=55 // pred_check
          %p338 = pneg %p48
        $region58: #{tpu_custom_call.1} parent=55 // pred_check_branch
          %340 = sbr.rel (%p338) target = $region60
        $region59: #{tpu_custom_call.1} parent=55 // pred_region
          %341 = dma.done %s334, 256
        $region60: #{tpu_custom_call.1} parent=55 // pred_fallthru
          _
        // Predicated region
        $region61: #{tpu_custom_call.1} parent=55 // pred_check
          %p342 = pneg %p69
        $region62: #{tpu_custom_call.1} parent=55 // pred_check_branch
          %344 = sbr.rel (%p342) target = $region64
        $region63: #{tpu_custom_call.1} parent=55 // pred_region
          %345 = dma.done [#allocation6], 1024
        $region64: #{tpu_custom_call.1} parent=55 // pred_fallthru
          _
        // Predicated region
        $region65: #{tpu_custom_call.1} parent=55 // pred_check
          %p346 = pneg %p153
        $region66: #{tpu_custom_call.1} parent=55 // pred_check_branch
          %348 = sbr.rel (%p346) target = $region68
        $region67: #{tpu_custom_call.1} parent=55 // pred_region
          %349 = dma.done [#allocation6], 1024
        $region68: #{tpu_custom_call.1} parent=55 // pred_fallthru
          _
        %s350 = sand.u32 %s35, 1
        %s351 = scalar_lea.sflag [#allocation3], %s350
        %s352 = sand.u32 %s35, 1
        %s353 = smul.addr %s352, 16
        %s354 = scalar_lea.vmem [#allocation2], %s353
        %p355 = pneg %p48
        %p356 = pneg %p45
        %p357 = pneg %p69
        %p358 = pneg %p66
        %p359 = pneg %p90
        %p360 = pneg %p87
        %p361 = pneg %p111
        %p362 = pneg %p108
        %p363 = pneg %p132
        %p364 = pneg %p129
        %p365 = pneg %p153
        %p366 = pneg %p150
        %p367 = pneg %p174
        %p368 = pneg %p171
        %p369 = pneg %p195
        %p370 = pneg %p192
        %p371 = pneg %p216
        %p372 = pneg %p213
        %p373 = pneg %p242
        %p374 = pneg %p239
        %s375 = sand.u32 %s229, 1
        %s376 = scalar_lea.sflag [#allocation4], %s375
        %s377 = sand.u32 %s229, 1
        %s378 = smul.addr %s377, 32
        %s379 = scalar_lea.vmem [#allocation8], %s378
        %s380 = smul.u32 4, %s27
        %s381 = smul.u32 4, %s27
        %v383 = vld [vmem:[%s337] sm:$0xf]
        %v384 = vld [vmem:[%s337 + $0x4] sm:$0xf]
        %v385 = vld [vmem:[%s337 + $0x8] sm:$0xf]
        %v386 = vld [vmem:[%s337 + $0xc] sm:$0xf]
        %v387 = vld [vmem:[#allocation5] sm:$0xf]
        %v388 = vld [vmem:[#allocation5 + $0x4] sm:$0xf]
        %v389 = vld [vmem:[#allocation5 + $0x8] sm:$0xf]
        %v390 = vld [vmem:[#allocation5 + $0xc] sm:$0xf]
        %v391 = vld [vmem:[#allocation5 + $0x10] sm:$0xf]
        %v392 = vld [vmem:[#allocation5 + $0x14] sm:$0xf]
        %v393 = vld [vmem:[#allocation5 + $0x18] sm:$0xf]
        %v394 = vld [vmem:[#allocation5 + $0x1c] sm:$0xf]
        %v395 = vld [vmem:[#allocation5 + $0x20] sm:$0xf]
        %v396 = vld [vmem:[#allocation5 + $0x24] sm:$0xf]
        %v397 = vld [vmem:[#allocation5 + $0x28] sm:$0xf]
        %v398 = vld [vmem:[#allocation5 + $0x2c] sm:$0xf]
        %v399 = vld [vmem:[#allocation5 + $0x30] sm:$0xf]
        %v400 = vld [vmem:[#allocation5 + $0x34] sm:$0xf]
        %v401 = vld [vmem:[#allocation5 + $0x38] sm:$0xf]
        %v402 = vld [vmem:[#allocation5 + $0x3c] sm:$0xf]
        %v403 = vld [vmem:[%s2] sm:$0x1]
        %v405 = vlaneseq
        %v406 = vshrl.u32 %v405, 7
        %v407 = vsub.s32 0, %v406
        %v408 = vrot.slane %v403, %v407
        %v414 = vunpack.c.l.b16 %v383
        %v415 = vunpack.c.l.b16 %v384
        %v416 = vunpack.c.l.b16 %v385
        %v417 = vunpack.c.l.b16 %v386
        %v418 = vpack.c.b16 %v415, %v414
        %v419 = vpack.c.b16 %v417, %v416
        %v438 = vunpack.c.l.b16 %v387
        %v439 = vunpack.c.l.b16 %v388
        %v440 = vunpack.c.l.b16 %v389
        %v441 = vunpack.c.l.b16 %v390
        %v442 = vunpack.c.l.b16 %v391
        %v443 = vunpack.c.l.b16 %v392
        %v444 = vunpack.c.l.b16 %v393
        %v445 = vunpack.c.l.b16 %v394
        %v446 = vunpack.c.l.b16 %v395
        %v447 = vunpack.c.l.b16 %v396
        %v448 = vunpack.c.l.b16 %v397
        %v449 = vunpack.c.l.b16 %v398
        %v450 = vunpack.c.l.b16 %v399
        %v451 = vunpack.c.l.b16 %v400
        %v452 = vunpack.c.l.b16 %v401
        %v453 = vunpack.c.l.b16 %v402
        %v454 = vpack.c.b16 %v439, %v438
        %v455 = vpack.c.b16 %v441, %v440
        %v456 = vpack.c.b16 %v443, %v442
        %v457 = vpack.c.b16 %v445, %v444
        %v458 = vpack.c.b16 %v447, %v446
        %v459 = vpack.c.b16 %v449, %v448
        %v460 = vpack.c.b16 %v451, %v450
        %v461 = vpack.c.b16 %v453, %v452
        %470 = vmatprep.subr.bf16.mxu0 0
        %471 = vmatpush1.bf16.msra.mxu0 %v461
        %472 = vmatprep.subr.bf16.mxu0 0
        %473 = vmatpush1.bf16.msra.mxu0 %v460
        %474 = vmatprep.subr.bf16.mxu0 0
        %475 = vmatpush1.bf16.msra.mxu0 %v459
        %476 = vmatprep.subr.bf16.mxu0 0
        %477 = vmatpush1.bf16.msra.mxu0 %v458
        %478 = vmatprep.subr.bf16.mxu0 0
        %479 = vmatpush1.bf16.msra.mxu0 %v457
        %480 = vmatprep.subr.bf16.mxu0 0
        %481 = vmatpush1.bf16.msra.mxu0 %v456
        %482 = vmatprep.subr.bf16.mxu0 0
        %483 = vmatpush1.bf16.msra.mxu0 %v455
        %484 = vmatprep.subr.bf16.mxu0 0
        %485 = vmatpush1.bf16.msra.mxu0 %v454
        %486 = vmatprep.subr.bf16.mxu0 0
        %487 = vmatpush2.bf16.msra.mxu0 0
        %488 = vmatprep.subr.bf16.mxu0 0
        %489 = vmatpush2.bf16.msra.mxu0 0
        %490 = vmatprep.subr.bf16.mxu0 0
        %491 = vmatpush2.bf16.msra.mxu0 0
        %492 = vmatprep.subr.bf16.mxu0 0
        %493 = vmatpush2.bf16.msra.mxu0 0
        %494 = vmatprep.subr.bf16.mxu0 0
        %495 = vmatpush2.bf16.msra.mxu0 0
        %496 = vmatprep.subr.bf16.mxu0 0
        %497 = vmatpush2.bf16.msra.mxu0 0
        %498 = vmatprep.subr.bf16.mxu0 0
        %499 = vmatpush2.bf16.msra.mxu0 0
        %500 = vmatprep.subr.bf16.mxu0 0
        %501 = vmatpush2.bf16.msra.mxu0 0
        %502 = vmatprep.mubr.bf16.mxu0 0
        %503 = vmatmul.mubr.bf16.gmra.mxu0 %v418
        %v504 = vpop.f32.mrf.mxu0
        %v505 = vadd.f32 %v408, %v504
        %v506 = vpop.f32.mrf.mxu0
        %v507 = vpop.f32.mrf.mxu0
        %v508 = vadd.f32 %v408, %v507
        %v509 = vpop.f32.mrf.mxu0
        %510 = vmatprep.mubr.bf16.mxu0 0
        %511 = vmatmul.mubr.bf16.gmra.mxu0 %v419
        %v512 = vpop.f32.mrf.mxu0
        %v513 = vadd.f32 %v408, %v512
        %v514 = vpop.f32.mrf.mxu0
        %v515 = vpop.f32.mrf.mxu0
        %v516 = vadd.f32 %v408, %v515
        %v517 = vpop.f32.mrf.mxu0
        %518 = vdwg.mxu0
        %v519 = vld [vmem:[%s3] sm:$0x1]
        %v520 = vld [vmem:[%s4] sm:$0x1]
        %521 = vadd.xlane.f32.xlu0 %v505
        %v522 = vpop.xlane.xlu0 %521
        %523 = vadd.xlane.f32.xlu0 %v508
        %v524 = vpop.xlane.xlu0 %523
        %525 = vadd.xlane.f32.xlu0 %v513
        %v526 = vpop.xlane.xlu0 %525
        %527 = vadd.xlane.f32.xlu0 %v516
        %v528 = vpop.xlane.xlu0 %527
        %v529 = vmul.f32 %v505, %v505
        %v530 = vmul.f32 %v508, %v508
        %v531 = vmul.f32 %v513, %v513
        %v532 = vmul.f32 %v516, %v516
        %533 = vadd.xlane.f32.xlu0 %v529
        %v534 = vpop.xlane.xlu0 %533
        %535 = vadd.xlane.f32.xlu0 %v530
        %v536 = vpop.xlane.xlu0 %535
        %537 = vadd.xlane.f32.xlu0 %v531
        %v538 = vpop.xlane.xlu0 %537
        %539 = vadd.xlane.f32.xlu0 %v532
        %v540 = vpop.xlane.xlu0 %539
        %v541 = vmul.f32 %v522, 0.020833334
        %v542 = vmul.f32 %v524, 0.020833334
        %v543 = vmul.f32 %v526, 0.020833334
        %v544 = vmul.f32 %v528, 0.020833334
        %v545 = vmul.f32 %v534, 0.020833334
        %v546 = vmul.f32 %v536, 0.020833334
        %v547 = vmul.f32 %v538, 0.020833334
        %v548 = vmul.f32 %v540, 0.020833334
        %v549 = vmul.f32 %v541, %v541
        %v550 = vmul.f32 %v542, %v542
        %v551 = vmul.f32 %v543, %v543
        %v552 = vmul.f32 %v544, %v544
        %v553 = vsub.f32 %v545, %v549
        %v554 = vsub.f32 %v546, %v550
        %v555 = vsub.f32 %v547, %v551
        %v556 = vsub.f32 %v548, %v552
        %v557 = vadd.f32 %v553, 1e-05
        %v558 = vadd.f32 %v554, 1e-05
        %v559 = vadd.f32 %v555, 1e-05
        %v560 = vadd.f32 %v556, 1e-05
        %v561 = vrsqrt.pop %v557
        %v562 = vrsqrt.pop %v558
        %v563 = vrsqrt.pop %v559
        %v564 = vrsqrt.pop %v560
        %v565 = vsub.f32 %v505, %v541
        %v566 = vsub.f32 %v508, %v542
        %v567 = vsub.f32 %v513, %v543
        %v568 = vsub.f32 %v516, %v544
        %v569 = vmul.f32 %v565, %v561
        %v570 = vmul.f32 %v566, %v562
        %v571 = vmul.f32 %v567, %v563
        %v572 = vmul.f32 %v568, %v564
        %v574 = vlaneseq
        %v575 = vshrl.u32 %v574, 7
        %v576 = vsub.s32 0, %v575
        %v577 = vrot.slane %v519, %v576
        %v579 = vmul.f32 %v569, %v577
        %v580 = vmul.f32 %v570, %v577
        %v581 = vmul.f32 %v571, %v577
        %v582 = vmul.f32 %v572, %v577
        %v584 = vlaneseq
        %v585 = vshrl.u32 %v584, 7
        %v586 = vsub.s32 0, %v585
        %v587 = vrot.slane %v520, %v586
        %v589 = vadd.f32 %v579, %v587
        %v590 = vadd.f32 %v580, %v587
        %v591 = vadd.f32 %v581, %v587
        %v592 = vadd.f32 %v582, %v587
        %v593 = vmax.f32 %v589, 0.0
        %v594 = vmax.f32 %v590, 0.0
        %v595 = vmax.f32 %v591, 0.0
        %v596 = vmax.f32 %v592, 0.0
        %v597 = vpack.c.bf16 %v594, %v593
        %v598 = vpack.c.bf16 %v596, %v595
        %v599 = vld [vmem:[#allocation7] sm:$0xf]
        %v600 = vld [vmem:[#allocation7 + $0x4] sm:$0xf]
        %v601 = vld [vmem:[#allocation7 + $0x8] sm:$0xf]
        %v602 = vld [vmem:[#allocation7 + $0xc] sm:$0xf]
        %v603 = vld [vmem:[#allocation7 + $0x10] sm:$0xf]
        %v604 = vld [vmem:[#allocation7 + $0x14] sm:$0xf]
        %v605 = vld [vmem:[#allocation7 + $0x18] sm:$0xf]
        %v606 = vld [vmem:[#allocation7 + $0x1c] sm:$0xf]
        %v607 = vld [vmem:[#allocation7 + $0x20] sm:$0xf]
        %v608 = vld [vmem:[#allocation7 + $0x24] sm:$0xf]
        %v609 = vld [vmem:[#allocation7 + $0x28] sm:$0xf]
        %v610 = vld [vmem:[#allocation7 + $0x2c] sm:$0xf]
        %v611 = vld [vmem:[#allocation7 + $0x30] sm:$0xf]
        %v612 = vld [vmem:[#allocation7 + $0x34] sm:$0xf]
        %v613 = vld [vmem:[#allocation7 + $0x38] sm:$0xf]
        %v614 = vld [vmem:[#allocation7 + $0x3c] sm:$0xf]
        %v615 = vld [vmem:[%s6] sm:$0x1]
        %v617 = vlaneseq
        %v618 = vshrl.u32 %v617, 7
        %v619 = vsub.s32 0, %v618
        %v620 = vrot.slane %v615, %v619
        %v638 = vunpack.c.l.b16 %v599
        %v639 = vunpack.c.l.b16 %v600
        %v640 = vunpack.c.l.b16 %v601
        %v641 = vunpack.c.l.b16 %v602
        %v642 = vunpack.c.l.b16 %v603
        %v643 = vunpack.c.l.b16 %v604
        %v644 = vunpack.c.l.b16 %v605
        %v645 = vunpack.c.l.b16 %v606
        %v646 = vunpack.c.l.b16 %v607
        %v647 = vunpack.c.l.b16 %v608
        %v648 = vunpack.c.l.b16 %v609
        %v649 = vunpack.c.l.b16 %v610
        %v650 = vunpack.c.l.b16 %v611
        %v651 = vunpack.c.l.b16 %v612
        %v652 = vunpack.c.l.b16 %v613
        %v653 = vunpack.c.l.b16 %v614
        %v654 = vpack.c.b16 %v639, %v638
        %v655 = vpack.c.b16 %v641, %v640
        %v656 = vpack.c.b16 %v643, %v642
        %v657 = vpack.c.b16 %v645, %v644
        %v658 = vpack.c.b16 %v647, %v646
        %v659 = vpack.c.b16 %v649, %v648
        %v660 = vpack.c.b16 %v651, %v650
        %v661 = vpack.c.b16 %v653, %v652
        %670 = vmatprep.subr.bf16.mxu0 0
        %671 = vmatpush1.bf16.msra.mxu0 %v661
        %672 = vmatprep.subr.bf16.mxu0 0
        %673 = vmatpush1.bf16.msra.mxu0 %v660
        %674 = vmatprep.subr.bf16.mxu0 0
        %675 = vmatpush1.bf16.msra.mxu0 %v659
        %676 = vmatprep.subr.bf16.mxu0 0
        %677 = vmatpush1.bf16.msra.mxu0 %v658
        %678 = vmatprep.subr.bf16.mxu0 0
        %679 = vmatpush1.bf16.msra.mxu0 %v657
        %680 = vmatprep.subr.bf16.mxu0 0
        %681 = vmatpush1.bf16.msra.mxu0 %v656
        %682 = vmatprep.subr.bf16.mxu0 0
        %683 = vmatpush1.bf16.msra.mxu0 %v655
        %684 = vmatprep.subr.bf16.mxu0 0
        %685 = vmatpush1.bf16.msra.mxu0 %v654
        %686 = vmatprep.subr.bf16.mxu0 0
        %687 = vmatpush2.bf16.msra.mxu0 0
        %688 = vmatprep.subr.bf16.mxu0 0
        %689 = vmatpush2.bf16.msra.mxu0 0
        %690 = vmatprep.subr.bf16.mxu0 0
        %691 = vmatpush2.bf16.msra.mxu0 0
        %692 = vmatprep.subr.bf16.mxu0 0
        %693 = vmatpush2.bf16.msra.mxu0 0
        %694 = vmatprep.subr.bf16.mxu0 0
        %695 = vmatpush2.bf16.msra.mxu0 0
        %696 = vmatprep.subr.bf16.mxu0 0
        %697 = vmatpush2.bf16.msra.mxu0 0
        %698 = vmatprep.subr.bf16.mxu0 0
        %699 = vmatpush2.bf16.msra.mxu0 0
        %700 = vmatprep.subr.bf16.mxu0 0
        %701 = vmatpush2.bf16.msra.mxu0 0
        %702 = vmatprep.mubr.bf16.mxu0 0
        %703 = vmatmul.mubr.bf16.gmra.mxu0 %v597
        %v704 = vpop.f32.mrf.mxu0
        %v705 = vadd.f32 %v620, %v704
        %v706 = vpop.f32.mrf.mxu0
        %v707 = vpop.f32.mrf.mxu0
        %v708 = vadd.f32 %v620, %v707
        %v709 = vpop.f32.mrf.mxu0
        %710 = vmatprep.mubr.bf16.mxu0 0
        %711 = vmatmul.mubr.bf16.gmra.mxu0 %v598
        %v712 = vpop.f32.mrf.mxu0
        %v713 = vadd.f32 %v620, %v712
        %v714 = vpop.f32.mrf.mxu0
        %v715 = vpop.f32.mrf.mxu0
        %v716 = vadd.f32 %v620, %v715
        %v717 = vpop.f32.mrf.mxu0
        %718 = vdwg.mxu0
        %v719 = vld [vmem:[%s7] sm:$0x1]
        %v720 = vld [vmem:[%s8] sm:$0x1]
        %721 = vadd.xlane.f32.xlu0 %v705
        %v722 = vpop.xlane.xlu0 %721
        %723 = vadd.xlane.f32.xlu0 %v708
        %v724 = vpop.xlane.xlu0 %723
        %725 = vadd.xlane.f32.xlu0 %v713
        %v726 = vpop.xlane.xlu0 %725
        %727 = vadd.xlane.f32.xlu0 %v716
        %v728 = vpop.xlane.xlu0 %727
        %v729 = vmul.f32 %v705, %v705
        %v730 = vmul.f32 %v708, %v708
        %v731 = vmul.f32 %v713, %v713
        %v732 = vmul.f32 %v716, %v716
        %733 = vadd.xlane.f32.xlu0 %v729
        %v734 = vpop.xlane.xlu0 %733
        %735 = vadd.xlane.f32.xlu0 %v730
        %v736 = vpop.xlane.xlu0 %735
        %737 = vadd.xlane.f32.xlu0 %v731
        %v738 = vpop.xlane.xlu0 %737
        %739 = vadd.xlane.f32.xlu0 %v732
        %v740 = vpop.xlane.xlu0 %739
        %v741 = vmul.f32 %v722, 0.020833334
        %v742 = vmul.f32 %v724, 0.020833334
        %v743 = vmul.f32 %v726, 0.020833334
        %v744 = vmul.f32 %v728, 0.020833334
        %v745 = vmul.f32 %v734, 0.020833334
        %v746 = vmul.f32 %v736, 0.020833334
        %v747 = vmul.f32 %v738, 0.020833334
        %v748 = vmul.f32 %v740, 0.020833334
        %v749 = vmul.f32 %v741, %v741
        %v750 = vmul.f32 %v742, %v742
        %v751 = vmul.f32 %v743, %v743
        %v752 = vmul.f32 %v744, %v744
        %v753 = vsub.f32 %v745, %v749
        %v754 = vsub.f32 %v746, %v750
        %v755 = vsub.f32 %v747, %v751
        %v756 = vsub.f32 %v748, %v752
        %v757 = vadd.f32 %v753, 1e-05
        %v758 = vadd.f32 %v754, 1e-05
        %v759 = vadd.f32 %v755, 1e-05
        %v760 = vadd.f32 %v756, 1e-05
        %v761 = vrsqrt.pop %v757
        %v762 = vrsqrt.pop %v758
        %v763 = vrsqrt.pop %v759
        %v764 = vrsqrt.pop %v760
        %v765 = vsub.f32 %v705, %v741
        %v766 = vsub.f32 %v708, %v742
        %v767 = vsub.f32 %v713, %v743
        %v768 = vsub.f32 %v716, %v744
        %v769 = vmul.f32 %v765, %v761
        %v770 = vmul.f32 %v766, %v762
        %v771 = vmul.f32 %v767, %v763
        %v772 = vmul.f32 %v768, %v764
        %v774 = vlaneseq
        %v775 = vshrl.u32 %v774, 7
        %v776 = vsub.s32 0, %v775
        %v777 = vrot.slane %v719, %v776
        %v779 = vmul.f32 %v769, %v777
        %v780 = vmul.f32 %v770, %v777
        %v781 = vmul.f32 %v771, %v777
        %v782 = vmul.f32 %v772, %v777
        %v784 = vlaneseq
        %v785 = vshrl.u32 %v784, 7
        %v786 = vsub.s32 0, %v785
        %v787 = vrot.slane %v720, %v786
        %v789 = vadd.f32 %v779, %v787
        %v790 = vadd.f32 %v780, %v787
        %v791 = vadd.f32 %v781, %v787
        %v792 = vadd.f32 %v782, %v787
        %v793 = vmax.f32 %v789, 0.0
        %v794 = vmax.f32 %v790, 0.0
        %v795 = vmax.f32 %v791, 0.0
        %v796 = vmax.f32 %v792, 0.0
        %797 = vst [vmem:[%s379] sm:$0xff] %v793
        %798 = vst [vmem:[%s379 + $0x8] sm:$0xff] %v794
        %799 = vst [vmem:[%s379 + $0x10] sm:$0xff] %v795
        %800 = vst [vmem:[%s379 + $0x18] sm:$0xff] %v796
        %s801 = sand.u32 %s229, 1
        %s802 = scalar_lea.sflag [#allocation4], %s801
        %s803 = sand.u32 %s229, 1
        %s804 = smul.addr %s803, 32
        %s805 = scalar_lea.vmem [#allocation8], %s804
        // Predicated region
        $region69: #{tpu_custom_call.1} parent=55 // pred_check
          %p806 = pneg %p239
        $region70: #{tpu_custom_call.1} parent=55 // pred_check_branch
          %808 = sbr.rel (%p806) target = $region72
        $region71: #{tpu_custom_call.1} parent=55 // pred_region
          %s809 = smul.u32 4, %s27
          %s811 = ssub.s32 512, 512
          %812 = vsyncadd %s802, %s811
          %s813 = smul.addr %s809, 128
          %s814 = scalar_lea.hbm %s9, %s813
          %s815 = sshll.u32 %s805, 4
          %s816 = int_to_ptr.vmem [resolvable:$true] %s815
          %821 = dma.vmem_to_hbm [thread:$0]  %s816, 512, %s814, %s802, 128, 128, 8
        $region72: #{tpu_custom_call.1} parent=55 // pred_fallthru
          _
      $region56: #{tpu_custom_call.1} parent=5 // pred_fallthru
        _
      %p822 = scmp.le.s32.totalorder 2, %s22
      // Predicated region
      $region73: #{tpu_custom_call.1} parent=5 // pred_check
        %p823 = pneg %p822
      $region74: #{tpu_custom_call.1} parent=5 // pred_check_branch
        %825 = sbr.rel (%p823) target = $region76
      $region75: #{tpu_custom_call.1} parent=5 // pred_region
        %s826 = ssub.s32 %s22, 2
        // Predicated region
        $region77: #{tpu_custom_call.1} parent=75 // pred_check
          %p827 = pneg %p245
        $region78: #{tpu_custom_call.1} parent=75 // pred_check_branch
          %829 = sbr.rel (%p827) target = $region80
        $region79: #{tpu_custom_call.1} parent=75 // pred_region
          %s830 = sand.u32 %s230, 1
          %s831 = scalar_lea.sflag [#allocation4], %s830
          %s832 = sand.u32 %s230, 1
          %s833 = smul.addr %s832, 32
          %s834 = scalar_lea.vmem [#allocation8], %s833
          %835 = dma.done %s831, 512
        $region80: #{tpu_custom_call.1} parent=75 // pred_fallthru
          _
      $region76: #{tpu_custom_call.1} parent=5 // pred_fallthru
        _
    $region6: #{tpu_custom_call.1} parent=1 // loop_footer
      %s26 = sadd.s32 1, %s22
    $region7: #{tpu_custom_call.1} parent=1 // loop_footer_branch
      %21 = sbr.rel target = $region3
    $region8: #{tpu_custom_call.1} parent=1 // loop_exit
      _
    %836 = vsyncpa [#allocation3], 1
    %s837 = scalar_lea.sflag [#allocation3], 1
    %838 = vsyncpa %s837, 1
    %839 = vsyncpa [#allocation6], 1
    %840 = vsyncpa [#allocation4], 1
    %s841 = scalar_lea.sflag [#allocation4], 1
    %842 = vsyncpa %s841, 1

</llo_original>
